<compile_context>
chip_gen: v6e
topology: v6e:2x2x1
jax: 0.10.0
libtpu: 0.0.40
codegen_flags: <defaults>
</compile_context>

<pallas_src>
import functools

import jax
import jax.numpy as jnp
from jax.experimental import pallas as pl
from jax.experimental.pallas import tpu as pltpu

BN_EPS = 1e-5
LANE = 128
SUBLANE = 8


def _round_up(n, m):
    return ((n + m - 1) // m) * m


# ----------------------------- Pallas kernels -----------------------------

def _resblock_kernel_ds(sbeta_ref, x_ref, wcat_ref, bds_ref, gamma_ref, beta_ref,
                        o_ref, *, inv_b):
    """ResBlock with downsample. One grid step = one TILE_N slab of output features.

    wcat tile layout: [:, :TILE_N] = fc columns of this tile,
                      [:, TILE_N:] = downsample columns of this tile.
    `inv_b` = 1 / real_batch (padded h rows are exactly zero, so sums are unaffected).
    """
    tn = o_ref.shape[-1]

    # Single fused MXU matmul: (Bp, Kp) @ (Kp, 2*TILE_N) -> lane-dense (Bp, 2*TILE_N).
    hh = jnp.dot(x_ref[...], wcat_ref[...], preferred_element_type=jnp.float32)
    h = hh[:, :tn]                       # fc output (b_fc omitted: cancels in BN)
    res = hh[:, tn:] + bds_ref[...]      # downsampled residual (bias NOT cancelled)

    # BatchNorm1d (training-mode batch stats), single reduction pass.
    s = jnp.sum(h, axis=0, keepdims=True)
    ss = jnp.sum(h * h, axis=0, keepdims=True)
    mean = s * inv_b
    var = jnp.maximum(ss * inv_b - mean * mean, 0.0)
    scale = gamma_ref[...] * jax.lax.rsqrt(var + BN_EPS)   # rsqrt -> EUP slot
    shift = beta_ref[...] - mean * scale
    bn = h * scale + shift

    # Swish with trainable beta (scalar from SMEM).
    sb = sbeta_ref[0]
    act = bn * jax.nn.sigmoid(sb * bn)

    o_ref[...] = (act + res).astype(o_ref.dtype)


def _resblock_kernel_id(sbeta_ref, x_ref, xres_ref, wfc_ref, gamma_ref, beta_ref,
                        o_ref, *, inv_b):
    """ResBlock without downsample (in_dim == out_dim): residual = x tile."""
    h = jnp.dot(x_ref[...], wfc_ref[...], preferred_element_type=jnp.float32)

    s = jnp.sum(h, axis=0, keepdims=True)
    ss = jnp.sum(h * h, axis=0, keepdims=True)
    mean = s * inv_b
    var = jnp.maximum(ss * inv_b - mean * mean, 0.0)
    scale = gamma_ref[...] * jax.lax.rsqrt(var + BN_EPS)
    shift = beta_ref[...] - mean * scale
    bn = h * scale + shift

    sb = sbeta_ref[0]
    act = bn * jax.nn.sigmoid(sb * bn)

    o_ref[...] = (act + xres_ref[...]).astype(o_ref.dtype)


# --------------------------- one-time param prep ---------------------------

def prepare_resblock_params(params, tile_n=LANE):
    """Pad to 128-aligned shapes, transpose, and pack [fc | ds] per output tile.

    Done once at init / param-update time, NOT per forward call.
    """
    assert tile_n % LANE == 0
    out_dim, in_dim = params["w_fc"].shape
    kp = _round_up(in_dim, LANE)
    np_ = _round_up(out_dim, tile_n)
    n_tiles = np_ // tile_n
    f32 = jnp.float32

    w_fc_t = jnp.zeros((kp, np_), f32).at[:in_dim, :out_dim].set(params["w_fc"].T)
    gamma = jnp.ones((1, np_), f32).at[0, :out_dim].set(params["bn_gamma"])
    beta = jnp.zeros((1, np_), f32).at[0, :out_dim].set(params["bn_beta"])
    sbeta = jnp.reshape(params["swish_beta"], (1,)).astype(f32)

    prep = {
        "in_dim": in_dim, "out_dim": out_dim,
        "kp": kp, "np": np_, "tile_n": tile_n, "n_tiles": n_tiles,
        "gamma": gamma, "beta": beta, "sbeta": sbeta,
    }

    if params["w_ds"] is not None:
        w_ds_t = jnp.zeros((kp, np_), f32).at[:in_dim, :out_dim].set(params["w_ds"].T)
        b_ds = jnp.zeros((1, np_), f32).at[0, :out_dim].set(params["b_ds"])
        # Pack per tile: cols [j*2T, j*2T+T) = fc tile j, [j*2T+T, (j+1)*2T) = ds tile j.
        wfc_tiles = w_fc_t.reshape(kp, n_tiles, tile_n)
        wds_tiles = w_ds_t.reshape(kp, n_tiles, tile_n)
        prep["w_cat"] = jnp.concatenate([wfc_tiles, wds_tiles], axis=2).reshape(kp, 2 * np_)
        prep["b_ds"] = b_ds
        prep["w_fc_t"] = None
    else:
        assert kp == np_, "identity residual requires equal padded dims (use tile_n=128)"
        prep["w_cat"] = None
        prep["b_ds"] = None
        prep["w_fc_t"] = w_fc_t
    return prep


# ------------------------------- forward pass ------------------------------

def resblock_forward(x, prep):
    """ResBlock forward via a single pallas_call (grid over output-feature tiles)."""
    B, in_dim = x.shape
    assert in_dim == prep["in_dim"]

    kp, np_, tile_n, n_tiles = prep["kp"], prep["np"], prep["tile_n"], prep["n_tiles"]
    out_dim = prep["out_dim"]

    # Pad batch to the f32 sublane multiple; padded rows are zero and contribute
    # nothing to the BN sums (b_fc is folded away), so stats stay exact.
    bp = _round_up(max(B, SUBLANE), SUBLANE)
    inv_b = 1.0 / float(B)

    xp = jnp.zeros((bp, kp), jnp.float32).at[:B, :in_dim].set(x.astype(jnp.float32))

    out_shape = jax.ShapeDtypeStruct((bp, np_), jnp.float32)
    smem_spec = pl.BlockSpec(memory_space=pltpu.MemorySpace.SMEM)
    x_spec = pl.BlockSpec((bp, kp), lambda j: (0, 0))       # constant -> stays resident
    col_spec = pl.BlockSpec((1, tile_n), lambda j: (0, j))
    out_spec = pl.BlockSpec((bp, tile_n), lambda j: (0, j))
    cparams = pltpu.CompilerParams(dimension_semantics=("parallel",))

    if prep["w_cat"] is not None:
        out = pl.pallas_call(
            functools.partial(_resblock_kernel_ds, inv_b=inv_b),
            out_shape=out_shape,
            grid=(n_tiles,),
            in_specs=[
                smem_spec,                                            # swish beta (scalar)
                x_spec,                                               # x (full batch, full K)
                pl.BlockSpec((kp, 2 * tile_n), lambda j: (0, j)),     # packed [fc|ds] tile
                col_spec,                                             # b_ds tile
                col_spec,                                             # gamma tile
                col_spec,                                             # beta tile
            ],
            out_specs=out_spec,
            compiler_params=cparams,
        )(prep["sbeta"], xp, prep["w_cat"], prep["b_ds"], prep["gamma"], prep["beta"])
    else:
        out = pl.pallas_call(
            functools.partial(_resblock_kernel_id, inv_b=inv_b),
            out_shape=out_shape,
            grid=(n_tiles,),
            in_specs=[
                smem_spec,                                            # swish beta (scalar)
                x_spec,                                               # x (full, for matmul)
                pl.BlockSpec((bp, tile_n), lambda j: (0, j)),         # x tile (residual)
                pl.BlockSpec((kp, tile_n), lambda j: (0, j)),         # w_fc tile
                col_spec,                                             # gamma tile
                col_spec,                                             # beta tile
            ],
            out_specs=out_spec,
            compiler_params=cparams,
        )(prep["sbeta"], xp, xp, prep["w_fc_t"], prep["gamma"], prep["beta"])

    return out[:B, :out_dim]


# ------------------------- deterministic param init ------------------------

def _kaiming_normal(key, out_dim, in_dim):
    # nonlinearity='leaky_relu', a=0 (PyTorch default) -> gain = sqrt(2)
    std = jnp.sqrt(2.0) / jnp.sqrt(jnp.asarray(in_dim, jnp.float32))
    return std * jax.random.normal(key, (out_dim, in_dim), dtype=jnp.float32)


def _linear_bias(key, in_dim, out_dim):
    bound = 1.0 / jnp.sqrt(jnp.asarray(in_dim, jnp.float32))
    return jax.random.uniform(key, (out_dim,), jnp.float32, -bound, bound)


def _spectral_normalize(w, key, n_iter=3, eps=1e-12):
    """Mimic torch spectral_norm: power iterations from a random u, W / sigma."""
    # TODO(synk): torch keeps a persistent power-iteration state updated every forward;
    # here spectral norm is applied once at init (inference-style), not re-estimated.
    out_dim, _ = w.shape
    u = jax.random.normal(key, (out_dim,), dtype=jnp.float32)
    u = u / (jnp.linalg.norm(u) + eps)
    v = None
    for _ in range(n_iter):
        v = w.T @ u
        v = v / (jnp.linalg.norm(v) + eps)
        u = w @ v
        u = u / (jnp.linalg.norm(u) + eps)
    sigma = u @ (w @ v)
    return w / sigma


def init_resblock_params(key, in_dim, out_dim):
    ks = jax.random.split(key, 6)
    w_fc = _spectral_normalize(_kaiming_normal(ks[0], out_dim, in_dim), ks[1])
    b_fc = _linear_bias(ks[2], in_dim, out_dim)
    if in_dim != out_dim:
        w_ds = _spectral_normalize(_kaiming_normal(ks[3], out_dim, in_dim), ks[4])
        b_ds = _linear_bias(ks[5], in_dim, out_dim)
    else:
        w_ds, b_ds = None, None
    return {
        "w_fc": w_fc, "b_fc": b_fc,       # b_fc kept for the reference; kernel drops it (BN cancels it)
        "w_ds": w_ds, "b_ds": b_ds,
        "bn_gamma": jnp.ones((out_dim,), jnp.float32),
        "bn_beta": jnp.zeros((out_dim,), jnp.float32),
        "swish_beta": jnp.asarray(1.0, jnp.float32),   # Swish(trainable_beta=True, initial_beta=1.0)
    }


# --------------------------- pure-JAX reference ----------------------------

def resblock_reference(x, params):
    h = x @ params["w_fc"].T + params["b_fc"]
    mean = jnp.mean(h, axis=0, keepdims=True)
    var = jnp.mean((h - mean) ** 2, axis=0, keepdims=True)
    bn = params["bn_gamma"] * (h - mean) / jnp.sqrt(var + BN_EPS) + params["bn_beta"]
    act = bn * jax.nn.sigmoid(params["swish_beta"] * bn)
    res = x if params["w_ds"] is None else x @ params["w_ds"].T + params["b_ds"]
    return act + res


# ---------------------------------- main -----------------------------------

if __name__ == "__main__":
    key = jax.random.PRNGKey(0)
    k_x, k_x2, k_p, k_p2 = jax.random.split(key, 4)

    # --- downsample path (in_dim != out_dim), batch a multiple of 8 ---
    B, in_dim, out_dim = 8, 32, 64
    x = jax.random.normal(k_x, (B, in_dim), dtype=jnp.float32)
    params = init_resblock_params(k_p, in_dim, out_dim)
    prep = prepare_resblock_params(params)

    out = jax.block_until_ready(resblock_forward(x, prep))
    ref = resblock_reference(x, params)
    assert out.shape == (B, out_dim)
    assert jnp.allclose(out, ref, atol=1e-3, rtol=1e-3), \
        f"downsample path: max abs err {jnp.max(jnp.abs(out - ref))}"

    # --- identity path (in_dim == out_dim), batch NOT a multiple of 8 ---
    B2 = 6
    params_id = init_resblock_params(k_p2, out_dim, out_dim)
    prep_id = prepare_resblock_params(params_id)
    x2 = jax.random.normal(k_x2, (B2, out_dim), dtype=jnp.float32)

    out2 = jax.block_until_ready(resblock_forward(x2, prep_id))
    ref2 = resblock_reference(x2, params_id)
    assert out2.shape == (B2, out_dim)
    assert jnp.allclose(out2, ref2, atol=1e-3, rtol=1e-3), \
        f"identity path: max abs err {jnp.max(jnp.abs(out2 - ref2))}"

    print("KERNEL_OK")
</pallas_src>

<mosaic_0001>
module attributes {stable_mosaic.version = 11 : i64} {
  func.func @_resblock_kernel_ds(%arg0: i32, %arg1: memref<1xf32, #tpu.memory_space<smem>>, %arg2: memref<8x128xf32, #tpu.memory_space<vmem>>, %arg3: memref<128x256xf32, #tpu.memory_space<vmem>>, %arg4: memref<1x128xf32, #tpu.memory_space<vmem>>, %arg5: memref<1x128xf32, #tpu.memory_space<vmem>>, %arg6: memref<1x128xf32, #tpu.memory_space<vmem>>, %arg7: memref<8x128xf32, #tpu.memory_space<vmem>>) attributes {dimension_semantics = [#tpu.dimension_semantics<parallel>], iteration_bounds = array<i64: 1>, scalar_prefetch = 0 : i64, scratch_operands = 0 : i64, tpu.core_type = #tpu.core_type<tc>, window_params = [{transform_indices = @transform_0, window_bounds = array<i64: 1>}, {pipeline_mode = #tpu.pipeline_mode<synchronous>, transform_indices = @transform_1, window_bounds = array<i64: 8, 128>}, {transform_indices = @transform_2, window_bounds = array<i64: 128, 256>}, {transform_indices = @transform_3, window_bounds = array<i64: 1, 128>}, {transform_indices = @transform_4, window_bounds = array<i64: 1, 128>}, {transform_indices = @transform_5, window_bounds = array<i64: 1, 128>}, {transform_indices = @transform_6, window_bounds = array<i64: 8, 128>}]} {
    %c0 = arith.constant 0 : index
    %c0_0 = arith.constant 0 : index
    %0 = vector.load %arg2[%c0, %c0_0] : memref<8x128xf32, #tpu.memory_space<vmem>>, vector<8x128xf32>
    %c0_1 = arith.constant 0 : index
    %c0_2 = arith.constant 0 : index
    %1 = vector.load %arg3[%c0_1, %c0_2] : memref<128x256xf32, #tpu.memory_space<vmem>>, vector<128x256xf32>
    %cst = arith.constant dense<0.000000e+00> : vector<8x256xf32>
    %2 = tpu.matmul %0, %1, %cst {dimension_numbers = #tpu.dot_dimension_numbers<[1], [0], [0], [1], [0, 0, 1, 1], [], []>} : vector<8x128xf32>, vector<128x256xf32>, vector<8x256xf32> -> vector<8x256xf32>
    %3 = vector.extract_strided_slice %2 {offsets = [0, 0], sizes = [8, 128], strides = [1, 1]} : vector<8x256xf32> to vector<8x128xf32>
    %4 = vector.extract_strided_slice %2 {offsets = [0, 128], sizes = [8, 128], strides = [1, 1]} : vector<8x256xf32> to vector<8x128xf32>
    %c0_3 = arith.constant 0 : index
    %c0_4 = arith.constant 0 : index
    %5 = vector.load %arg4[%c0_3, %c0_4] : memref<1x128xf32, #tpu.memory_space<vmem>>, vector<1x128xf32>
    %6 = vector.broadcast %5 : vector<1x128xf32> to vector<8x128xf32>
    %7 = arith.addf %4, %6 : vector<8x128xf32>
    %cst_5 = arith.constant dense<0.000000e+00> : vector<128xf32>
    %8 = vector.multi_reduction <add>, %3, %cst_5 [0] : vector<8x128xf32> to vector<128xf32>
    %9 = vector.shape_cast %8 : vector<128xf32> to vector<1x128xf32>
    %10 = arith.mulf %3, %3 : vector<8x128xf32>
    %cst_6 = arith.constant dense<0.000000e+00> : vector<128xf32>
    %11 = vector.multi_reduction <add>, %10, %cst_6 [0] : vector<8x128xf32> to vector<128xf32>
    %12 = vector.shape_cast %11 : vector<128xf32> to vector<1x128xf32>
    %cst_7 = arith.constant 1.250000e-01 : f32
    %13 = vector.broadcast %cst_7 : f32 to vector<1x128xf32>
    %14 = arith.mulf %9, %13 : vector<1x128xf32>
    %cst_8 = arith.constant 1.250000e-01 : f32
    %15 = vector.broadcast %cst_8 : f32 to vector<1x128xf32>
    %16 = arith.mulf %12, %15 : vector<1x128xf32>
    %17 = arith.mulf %14, %14 : vector<1x128xf32>
    %18 = arith.subf %16, %17 : vector<1x128xf32>
    %cst_9 = arith.constant 0.000000e+00 : f32
    %19 = vector.broadcast %cst_9 : f32 to vector<1x128xf32>
    %20 = arith.maximumf %18, %19 : vector<1x128xf32>
    %c0_10 = arith.constant 0 : index
    %c0_11 = arith.constant 0 : index
    %21 = vector.load %arg5[%c0_10, %c0_11] : memref<1x128xf32, #tpu.memory_space<vmem>>, vector<1x128xf32>
    %cst_12 = arith.constant 9.99999974E-6 : f32
    %22 = vector.broadcast %cst_12 : f32 to vector<1x128xf32>
    %23 = arith.addf %20, %22 : vector<1x128xf32>
    %24 = math.rsqrt %23 : vector<1x128xf32>
    %25 = arith.mulf %21, %24 : vector<1x128xf32>
    %c0_13 = arith.constant 0 : index
    %c0_14 = arith.constant 0 : index
    %26 = vector.load %arg6[%c0_13, %c0_14] : memref<1x128xf32, #tpu.memory_space<vmem>>, vector<1x128xf32>
    %27 = arith.mulf %14, %25 : vector<1x128xf32>
    %28 = arith.subf %26, %27 : vector<1x128xf32>
    %29 = vector.broadcast %25 : vector<1x128xf32> to vector<8x128xf32>
    %30 = arith.mulf %3, %29 : vector<8x128xf32>
    %31 = vector.broadcast %28 : vector<1x128xf32> to vector<8x128xf32>
    %32 = arith.addf %30, %31 : vector<8x128xf32>
    %c0_15 = arith.constant 0 : index
    %33 = memref.load %arg1[%c0_15] : memref<1xf32, #tpu.memory_space<smem>>
    %34 = vector.broadcast %33 : f32 to vector<8x128xf32>
    %35 = arith.mulf %34, %32 : vector<8x128xf32>
    %36 = arith.negf %35 : vector<8x128xf32>
    %37 = math.exp %36 : vector<8x128xf32>
    %cst_16 = arith.constant 1.000000e+00 : f32
    %38 = vector.broadcast %cst_16 : f32 to vector<8x128xf32>
    %39 = arith.addf %38, %37 : vector<8x128xf32>
    %40 = arith.divf %38, %39 : vector<8x128xf32>
    %41 = arith.mulf %32, %40 : vector<8x128xf32>
    %42 = arith.addf %41, %7 : vector<8x128xf32>
    %c0_17 = arith.constant 0 : index
    %c0_18 = arith.constant 0 : index
    %43 = vector.load %arg7[%c0_17, %c0_18] : memref<8x128xf32, #tpu.memory_space<vmem>>, vector<8x128xf32>
    tpu.vector_store %arg7[%c0_17, %c0_18], %42 {strides = array<i32>} : memref<8x128xf32, #tpu.memory_space<vmem>>, vector<8x128xf32>,
    return
  }
  func.func @transform_0(%arg0: i32) -> i32 {
    %c0_i32 = arith.constant 0 : i32
    %c0_i32_0 = arith.constant 0 : i32
    return %c0_i32 : i32
  }
  func.func @transform_1(%arg0: i32) -> (i32, i32) {
    %c0_i32 = arith.constant 0 : i32
    %c0_i32_0 = arith.constant 0 : i32
    %c0_i32_1 = arith.constant 0 : i32
    return %c0_i32, %c0_i32_0 : i32, i32
  }
  func.func @transform_2(%arg0: i32) -> (i32, i32) {
    %c0_i32 = arith.constant 0 : i32
    %c0_i32_0 = arith.constant 0 : i32
    return %c0_i32, %arg0 : i32, i32
  }
  func.func @transform_3(%arg0: i32) -> (i32, i32) {
    %c0_i32 = arith.constant 0 : i32
    %c0_i32_0 = arith.constant 0 : i32
    return %c0_i32, %arg0 : i32, i32
  }
  func.func @transform_4(%arg0: i32) -> (i32, i32) {
    %c0_i32 = arith.constant 0 : i32
    %c0_i32_0 = arith.constant 0 : i32
    return %c0_i32, %arg0 : i32, i32
  }
  func.func @transform_5(%arg0: i32) -> (i32, i32) {
    %c0_i32 = arith.constant 0 : i32
    %c0_i32_0 = arith.constant 0 : i32
    return %c0_i32, %arg0 : i32, i32
  }
  func.func @transform_6(%arg0: i32) -> (i32, i32) {
    %c0_i32 = arith.constant 0 : i32
    %c0_i32_0 = arith.constant 0 : i32
    return %c0_i32, %arg0 : i32, i32
  }
}

</mosaic_0001>

<llo_original>
// kernel: tpu_custom_call.1
$region0: #{tpu_custom_call.1}
  #allocation0 [shape = 'u32[]', space=smem, size = 0x4, offset = 0x4, fixed_abs, tag = 'smem constant byte address 0x4 - core index']
  #allocation1 [shape = 'u32[144,128]{1,0:T(1,128)}', space=vmem, size = 0x12000, scoped, tag = 'internal scratch']
  #allocation2 [shape = 'f32[1]{0:T(128)S(6)}', space=smem, size = 0x200, scoped, tag = 'scoped memory for tpu_custom_call.1']
  %s0 = inlined_call_operand.<no memory space> [shape: f32[1], index: 0, kind: input, shape index: {}]
  %s1 = inlined_call_operand.hbm [shape: f32[8,128], index: 1, kind: input, shape index: {}]
  %s2 = inlined_call_operand.hbm [shape: f32[128,256], index: 2, kind: input, shape index: {}]
  %s3 = inlined_call_operand.vmem [shape: f32[1,128], index: 3, kind: input, shape index: {}]
  %s4 = inlined_call_operand.vmem [shape: f32[1,128], index: 4, kind: input, shape index: {}]
  %s5 = inlined_call_operand.vmem [shape: f32[1,128], index: 5, kind: input, shape index: {}]
  %s6 = inlined_call_operand.hbm [shape: f32[8,128], index: 6, kind: output, shape index: {}]
  %s7 = sld [smem:[#allocation0]]
  $region42: #{tpu_custom_call.1} parent=0
    _
  %s9 = ssub.s32 1, %s7
  %s10 = scalar_select 0, %s9, %s7
  %11 = sst [smem:[#allocation2]] %s0
  $region1: #{tpu_custom_call.1} parent=0
    #allocation3 [shape = 'u8[4096]{0}', space=vmem, size = 0x1000, scoped, tag = 'input window, operand 1, single buffered']
    #allocation4 [shape = 's32[1]{0}', space=sflag, size = 0x4, scoped, tag = 'scoped memory for tpu_custom_call.1']
    #allocation5 [shape = 's32[1]{0}', space=sflag, size = 0x4, scoped, tag = 'scoped memory for tpu_custom_call.1']
    #allocation6 [shape = 'u8[131072]{0}', space=vmem, size = 0x20000, scoped, tag = 'input window, operand 2, single buffered']
    #allocation7 [shape = 's32[1]{0}', space=sflag, size = 0x4, scoped, tag = 'scoped memory for tpu_custom_call.1']
    #allocation8 [shape = 'u8[4096]{0}', space=vmem, size = 0x1000, scoped, tag = 'output window, operand 0, single buffered']
    %12 = vsyncpa [#allocation4], 0
    %13 = vsyncpa [#allocation7], 0
    %14 = vsyncpa [#allocation5], 0
    // Predicated region
    $region2: #{tpu_custom_call.1} parent=1 // pred_check
      _
    $region3: #{tpu_custom_call.1} parent=1 // pred_check_branch
      %16 = sbr.rel (0) target = $region5
    $region4: #{tpu_custom_call.1} parent=1 // pred_region
      _
    $region5: #{tpu_custom_call.1} parent=1 // pred_fallthru
      _
    // Predicated region
    $region6: #{tpu_custom_call.1} parent=1 // pred_check
      _
    $region7: #{tpu_custom_call.1} parent=1 // pred_check_branch
      %18 = sbr.rel (0) target = $region9
    $region8: #{tpu_custom_call.1} parent=1 // pred_region
      %s20 = ssub.s32 128, 128
      %21 = vsyncadd [#allocation4], %s20
      %s23 = sshll.u32 [#allocation3], 4
      %s24 = int_to_ptr.vmem [resolvable:$true] %s23
      %26 = dma.hbm_to_vmem [thread:$0]  %s1, 128, %s24, [#allocation4]
    $region9: #{tpu_custom_call.1} parent=1 // pred_fallthru
      _
    // Predicated region
    $region10: #{tpu_custom_call.1} parent=1 // pred_check
      _
    $region11: #{tpu_custom_call.1} parent=1 // pred_check_branch
      %28 = sbr.rel (0) target = $region13
    $region12: #{tpu_custom_call.1} parent=1 // pred_region
      %s30 = ssub.s32 4096, 4096
      %31 = vsyncadd [#allocation7], %s30
      %s32 = sshll.u32 [#allocation6], 4
      %s33 = int_to_ptr.vmem [resolvable:$true] %s32
      %38 = dma.hbm_to_vmem [thread:$0]  %s2, 4096, %s33, [#allocation7], 256, 256, 16
    $region13: #{tpu_custom_call.1} parent=1 // pred_fallthru
      _
    // Predicated region
    $region14: #{tpu_custom_call.1} parent=1 // pred_check
      _
    $region15: #{tpu_custom_call.1} parent=1 // pred_check_branch
      %40 = sbr.rel (0) target = $region17
    $region16: #{tpu_custom_call.1} parent=1 // pred_region
      _
    $region17: #{tpu_custom_call.1} parent=1 // pred_fallthru
      _
    // Predicated region
    $region18: #{tpu_custom_call.1} parent=1 // pred_check
      _
    $region19: #{tpu_custom_call.1} parent=1 // pred_check_branch
      %42 = sbr.rel (0) target = $region21
    $region20: #{tpu_custom_call.1} parent=1 // pred_region
      _
    $region21: #{tpu_custom_call.1} parent=1 // pred_fallthru
      _
    // Predicated region
    $region22: #{tpu_custom_call.1} parent=1 // pred_check
      _
    $region23: #{tpu_custom_call.1} parent=1 // pred_check_branch
      %44 = sbr.rel (0) target = $region25
    $region24: #{tpu_custom_call.1} parent=1 // pred_region
      _
    $region25: #{tpu_custom_call.1} parent=1 // pred_fallthru
      _
    // Predicated region
    $region26: #{tpu_custom_call.1} parent=1 // pred_check
      _
    $region27: #{tpu_custom_call.1} parent=1 // pred_check_branch
      %46 = sbr.rel (0) target = $region29
    $region28: #{tpu_custom_call.1} parent=1 // pred_region
      %47 = dma.done [#allocation4], 128
    $region29: #{tpu_custom_call.1} parent=1 // pred_fallthru
      _
    // Predicated region
    $region30: #{tpu_custom_call.1} parent=1 // pred_check
      _
    $region31: #{tpu_custom_call.1} parent=1 // pred_check_branch
      %49 = sbr.rel (0) target = $region33
    $region32: #{tpu_custom_call.1} parent=1 // pred_region
      %50 = dma.done [#allocation7], 4096
    $region33: #{tpu_custom_call.1} parent=1 // pred_fallthru
      _
    %v51 = vld [vmem:[#allocation3] sm:$0xff]
    %v52 = vld [vmem:[#allocation6] sm:$0xff]
    %v53 = vld [vmem:[#allocation6 + $0x8] sm:$0xff]
    %v54 = vld [vmem:[#allocation6 + $0x10] sm:$0xff]
    %v55 = vld [vmem:[#allocation6 + $0x18] sm:$0xff]
    %v56 = vld [vmem:[#allocation6 + $0x20] sm:$0xff]
    %v57 = vld [vmem:[#allocation6 + $0x28] sm:$0xff]
    %v58 = vld [vmem:[#allocation6 + $0x30] sm:$0xff]
    %v59 = vld [vmem:[#allocation6 + $0x38] sm:$0xff]
    %v60 = vld [vmem:[#allocation6 + $0x40] sm:$0xff]
    %v61 = vld [vmem:[#allocation6 + $0x48] sm:$0xff]
    %v62 = vld [vmem:[#allocation6 + $0x50] sm:$0xff]
    %v63 = vld [vmem:[#allocation6 + $0x58] sm:$0xff]
    %v64 = vld [vmem:[#allocation6 + $0x60] sm:$0xff]
    %v65 = vld [vmem:[#allocation6 + $0x68] sm:$0xff]
    %v66 = vld [vmem:[#allocation6 + $0x70] sm:$0xff]
    %v67 = vld [vmem:[#allocation6 + $0x78] sm:$0xff]
    %v68 = vld [vmem:[#allocation6 + $0x80] sm:$0xff]
    %v69 = vld [vmem:[#allocation6 + $0x88] sm:$0xff]
    %v70 = vld [vmem:[#allocation6 + $0x90] sm:$0xff]
    %v71 = vld [vmem:[#allocation6 + $0x98] sm:$0xff]
    %v72 = vld [vmem:[#allocation6 + $0xa0] sm:$0xff]
    %v73 = vld [vmem:[#allocation6 + $0xa8] sm:$0xff]
    %v74 = vld [vmem:[#allocation6 + $0xb0] sm:$0xff]
    %v75 = vld [vmem:[#allocation6 + $0xb8] sm:$0xff]
    %v76 = vld [vmem:[#allocation6 + $0xc0] sm:$0xff]
    %v77 = vld [vmem:[#allocation6 + $0xc8] sm:$0xff]
    %v78 = vld [vmem:[#allocation6 + $0xd0] sm:$0xff]
    %v79 = vld [vmem:[#allocation6 + $0xd8] sm:$0xff]
    %v80 = vld [vmem:[#allocation6 + $0xe0] sm:$0xff]
    %v81 = vld [vmem:[#allocation6 + $0xe8] sm:$0xff]
    %v82 = vld [vmem:[#allocation6 + $0xf0] sm:$0xff]
    %v83 = vld [vmem:[#allocation6 + $0xf8] sm:$0xff]
    %84 = vmatprep.subr.mxu0 %v83
    %85 = vmatpush1.msra.mxu0 %v82
    %86 = vmatprep.subr.mxu0 %v81
    %87 = vmatpush1.msra.mxu0 %v80
    %88 = vmatprep.subr.mxu0 %v79
    %89 = vmatpush1.msra.mxu0 %v78
    %90 = vmatprep.subr.mxu0 %v77
    %91 = vmatpush1.msra.mxu0 %v76
    %92 = vmatprep.subr.mxu0 %v75
    %93 = vmatpush1.msra.mxu0 %v74
    %94 = vmatprep.subr.mxu0 %v73
    %95 = vmatpush1.msra.mxu0 %v72
    %96 = vmatprep.subr.mxu0 %v71
    %97 = vmatpush1.msra.mxu0 %v70
    %98 = vmatprep.subr.mxu0 %v69
    %99 = vmatpush1.msra.mxu0 %v68
    %100 = vmatprep.subr.mxu0 %v67
    %101 = vmatpush1.msra.mxu0 %v66
    %102 = vmatprep.subr.mxu0 %v65
    %103 = vmatpush1.msra.mxu0 %v64
    %104 = vmatprep.subr.mxu0 %v63
    %105 = vmatpush1.msra.mxu0 %v62
    %106 = vmatprep.subr.mxu0 %v61
    %107 = vmatpush1.msra.mxu0 %v60
    %108 = vmatprep.subr.mxu0 %v59
    %109 = vmatpush1.msra.mxu0 %v58
    %110 = vmatprep.subr.mxu0 %v57
    %111 = vmatpush1.msra.mxu0 %v56
    %112 = vmatprep.subr.mxu0 %v55
    %113 = vmatpush1.msra.mxu0 %v54
    %114 = vmatprep.subr.mxu0 %v53
    %115 = vmatpush1.msra.mxu0 %v52
    %116 = vmatprep.subr.mxu0 0.0
    %117 = vmatpush2.msra.mxu0 0.0
    %118 = vmatprep.subr.mxu0 0.0
    %119 = vmatpush2.msra.mxu0 0.0
    %120 = vmatprep.subr.mxu0 0.0
    %121 = vmatpush2.msra.mxu0 0.0
    %122 = vmatprep.subr.mxu0 0.0
    %123 = vmatpush2.msra.mxu0 0.0
    %124 = vmatprep.subr.mxu0 0.0
    %125 = vmatpush2.msra.mxu0 0.0
    %126 = vmatprep.subr.mxu0 0.0
    %127 = vmatpush2.msra.mxu0 0.0
    %128 = vmatprep.subr.mxu0 0.0
    %129 = vmatpush2.msra.mxu0 0.0
    %130 = vmatprep.subr.mxu0 0.0
    %131 = vmatpush2.msra.mxu0 0.0
    %132 = vmatprep.subr.mxu0 0.0
    %133 = vmatpush2.msra.mxu0 0.0
    %134 = vmatprep.subr.mxu0 0.0
    %135 = vmatpush2.msra.mxu0 0.0
    %136 = vmatprep.subr.mxu0 0.0
    %137 = vmatpush2.msra.mxu0 0.0
    %138 = vmatprep.subr.mxu0 0.0
    %139 = vmatpush2.msra.mxu0 0.0
    %140 = vmatprep.subr.mxu0 0.0
    %141 = vmatpush2.msra.mxu0 0.0
    %142 = vmatprep.subr.mxu0 0.0
    %143 = vmatpush2.msra.mxu0 0.0
    %144 = vmatprep.subr.mxu0 0.0
    %145 = vmatpush2.msra.mxu0 0.0
    %146 = vmatprep.subr.mxu0 0.0
    %147 = vmatpush2.msra.mxu0 0.0
    %148 = vmatprep.mubr.f32.mxu0 0.0
    %149 = vmatmul.mubr.f32.gmra.mxu0 %v51
    %v150 = vpop.f32.mrf.mxu0
    %v151 = vadd.f32 0.0, %v150
    %v152 = vpop.f32.mrf.mxu0
    %v153 = vadd.f32 0.0, %v152
    %154 = vdwg.mxu0
    %v155 = vld [vmem:[%s3] sm:$0x1]
    %v157 = vlaneseq
    %v158 = vshrl.u32 %v157, 7
    %v159 = vsub.s32 0, %v158
    %v160 = vrot.slane %v155, %v159
    %v162 = vadd.f32 %v153, %v160
    %v163 = vrot.slane %v151, 4
    %v164 = vadd.f32 %v151, %v163
    %v165 = vrot.slane %v164, 2
    %v166 = vadd.f32 %v164, %v165
    %v167 = vrot.slane %v166, 1
    %v168 = vadd.f32 %v166, %v167
    %v169 = vmul.f32 %v151, %v151
    %v170 = vrot.slane %v169, 4
    %v171 = vadd.f32 %v169, %v170
    %v172 = vrot.slane %v171, 2
    %v173 = vadd.f32 %v171, %v172
    %v174 = vrot.slane %v173, 1
    %v175 = vadd.f32 %v173, %v174
    %v176 = vmul.f32 %v168, 0.125
    %v177 = vmul.f32 %v175, 0.125
    %v178 = vmul.f32 %v176, %v176
    %v179 = vsub.f32 %v177, %v178
    %v180 = vmax.f32 %v179, 0.0
    %v181 = vld [vmem:[%s4] sm:$0x1]
    %v182 = vadd.f32 %v180, 1e-05
    %v183 = vrsqrt.pop %v182
    %v184 = vmul.f32 %v181, %v183
    %v185 = vld [vmem:[%s5] sm:$0x1]
    %v186 = vmul.f32 %v176, %v184
    %v187 = vsub.f32 %v185, %v186
    %v189 = vlaneseq
    %v190 = vshrl.u32 %v189, 7
    %v191 = vsub.s32 0, %v190
    %v192 = vrot.slane %v184, %v191
    %v194 = vmul.f32 %v151, %v192
    %v196 = vlaneseq
    %v197 = vshrl.u32 %v196, 7
    %v198 = vsub.s32 0, %v197
    %v199 = vrot.slane %v187, %v198
    %v201 = vadd.f32 %v194, %v199
    %s202 = sld [smem:[#allocation2]]
    %v203 = vstv %s202
    %v204 = vmul.f32 %v203, %v201
    %v205 = vxor.u32 %v204, 2147483648
    %v206 = vmul.f32 %v205, 1.442695
    %v207 = vpow.pop %v206
    %v208 = vadd.f32 %v207, 1.0
    %v209 = vrcp.pop %v208
    %v210 = vmul.f32 1.0, %v209
    %v211 = vmul.f32 %v201, %v210
    %v212 = vadd.f32 %v211, %v162
    %213 = vst [vmem:[#allocation8] sm:$0xff] %v212
    // Predicated region
    $region34: #{tpu_custom_call.1} parent=1 // pred_check
      _
    $region35: #{tpu_custom_call.1} parent=1 // pred_check_branch
      %215 = sbr.rel (0) target = $region37
    $region36: #{tpu_custom_call.1} parent=1 // pred_region
      %s217 = ssub.s32 128, 128
      %218 = vsyncadd [#allocation5], %s217
      %s220 = sshll.u32 [#allocation8], 4
      %s221 = int_to_ptr.vmem [resolvable:$true] %s220
      %223 = dma.vmem_to_hbm [thread:$0]  %s221, 128, %s6, [#allocation5]
    $region37: #{tpu_custom_call.1} parent=1 // pred_fallthru
      _
    // Predicated region
    $region38: #{tpu_custom_call.1} parent=1 // pred_check
      _
    $region39: #{tpu_custom_call.1} parent=1 // pred_check_branch
      %225 = sbr.rel (0) target = $region41
    $region40: #{tpu_custom_call.1} parent=1 // pred_region
      %226 = dma.done [#allocation5], 128
    $region41: #{tpu_custom_call.1} parent=1 // pred_fallthru
      _
    %227 = vsyncpa [#allocation4], 1
    %228 = vsyncpa [#allocation7], 1
    %229 = vsyncpa [#allocation5], 1

</llo_original>
